<compile_context>
chip_gen: v7x
topology: tpu7x:2x2x1
jax: 0.10.0
libtpu: 0.0.40
codegen_flags: <defaults>
</compile_context>

<pallas_src>
import functools

import jax
import jax.numpy as jnp
from jax.experimental import pallas as pl
from jax.experimental.pallas import tpu as pltpu

HIDDEN = 16


def actor_kernel(xt_ref, p_ref, out_ref, *, action_range, state_dim, hidden,
                 action_dim):
    # xt_ref : (S, TB)                 -- batch along lanes (lane-dense)
    # p_ref  : (H, H + S + 2 + A + 1)  -- packed [w2 | w1 | b1 | b2 | w3t | b3]
    # out_ref: (A, TB)                 -- lane-dense output block
    S, H, A = state_dim, hidden, action_dim

    p = p_ref[...]                                 # tiny, resident across steps
    w2 = p[:, 0:H]                                 # (H, H)  lane-aligned for MXU
    w1 = p[:, H:H + S]                             # (H, S)  torch (out, in)
    b1 = p[:, H + S:H + S + 1]                     # (H, 1)
    b2 = p[:, H + S + 1:H + S + 2]                 # (H, 1)
    w3t = p[:, H + S + 2:H + S + 2 + A]            # (H, A)  fc3 weight, (in, out)
    b3 = p[0:A, H + S + 2 + A:H + S + 3 + A]       # (A, 1)

    xt = xt_ref[...]                               # (S, TB)

    # fc1 + relu: (H, S) @ (S, TB) on the MXU.  Replaces the VALU
    # broadcast-FMA chain (and its sublane replication) of the previous
    # version; the MXU/vector-extended slot had headroom, VALU was binding.
    h = jnp.dot(w1, xt, preferred_element_type=jnp.float32)
    h = jnp.maximum(h + b1, 0.0)                   # (H, TB)

    # fc2 + relu: (H, H) @ (H, TB) on the MXU.
    h = jnp.dot(w2, h, preferred_element_type=jnp.float32)
    h = jnp.maximum(h + b2, 0.0)                   # (H, TB)

    # fc3 + tanh*range: per action, lane-broadcast multiply (VPU) + sublane
    # reduce (XLU).  Keeps the (H, TB) activation from being pushed through
    # the MXU a second time; tanh goes to the EUP.
    for a in range(A):
        pre = jnp.sum(w3t[:, a:a + 1] * h, axis=0, keepdims=True)   # (1, TB)
        pre = pre + b3[a:a + 1, :]
        out_ref[a:a + 1, :] = (jnp.tanh(pre) * action_range).astype(out_ref.dtype)


def actor_forward(state, params, action_range, *, block_b=8192,
                  transposed_state=False):
    """Actor forward pass.

    state: (B, state_dim) f32 -> (B, action_dim) f32.  If
    `transposed_state=True`, `state` is already (state_dim, B) and no wrapper
    transpose copy is made at all.

    params = (w1, b1, w2, b2, w3, b3) in torch nn.Linear layout ((out, in)
    weights, (out,) biases).  action_range is baked into the kernel as a
    compile-time constant.  The batch axis is tiled lane-dense (tile multiple
    of 128) and marked "parallel"; no wrapper-side padding is done -- Pallas
    masks the ragged last block.  block_b up to ~16K needs no vmem_limit bump.
    """
    assert block_b % 128 == 0, "batch tile must be a multiple of 128"
    w1, b1, w2, b2, w3, b3 = params
    H = w1.shape[0]
    A = w3.shape[0]
    assert A <= H

    if transposed_state:
        S, B = state.shape
        xt = state                      # already (S, B): zero extra HBM passes
    else:
        B, S = state.shape
        xt = state.T                    # single small XLA copy (pad is gone)
    assert S == w1.shape[1]

    # Pack all weights/biases into one tiny resident slab (H, H + S + 2 + A + 1):
    # [w2 | w1 | b1 | b2 | w3^T | b3(padded to H rows)].
    packed = jnp.concatenate(
        [w2,
         w1,
         b1[:, None],
         b2[:, None],
         w3.T,
         jnp.pad(b3, (0, H - A))[:, None]],
        axis=1).astype(jnp.float32)

    # Batch tiling: biggest lane-dense tile up to block_b; for large batches
    # ensure >= 2 grid steps so both v7x TensorCores are used (the "parallel"
    # axis shards grid steps across cores).  Small batches keep one step.
    b_lane = pl.cdiv(B, 128) * 128
    tb = min(block_b, b_lane)
    if B >= 2048 and pl.cdiv(B, tb) < 2:
        tb = pl.cdiv(b_lane, 256) * 128          # ~round_up(b_lane/2, 128)
    nb = pl.cdiv(B, tb)

    kernel = functools.partial(
        actor_kernel,
        action_range=float(action_range),
        state_dim=int(S),
        hidden=int(H),
        action_dim=int(A),
    )

    out_t = pl.pallas_call(
        kernel,
        out_shape=jax.ShapeDtypeStruct((A, B), jnp.float32),
        grid=(nb,),
        in_specs=[
            pl.BlockSpec((S, tb), lambda i: (0, i)),        # batch tile, lanes dense
            pl.BlockSpec(packed.shape, lambda i: (0, 0)),   # params stay resident
        ],
        out_specs=pl.BlockSpec((A, tb), lambda i: (0, i)),  # lane-dense output
        compiler_params=pltpu.CompilerParams(
            dimension_semantics=("parallel",)),
    )(xt, packed)

    if A == 1:
        return out_t.reshape(B, A)      # (1, B) -> (B, 1): layout-free reshape
    return out_t.T


def init_actor_params(key, state_dim, action_dim):
    """Deterministic synthetic init, torch nn.Linear layout: W (out, in), b (out,)."""
    def linear(k, fan_in, fan_out):
        kw, kb = jax.random.split(k)
        bound = 1.0 / float(fan_in) ** 0.5
        w = jax.random.uniform(kw, (fan_out, fan_in), jnp.float32, -bound, bound)
        b = jax.random.uniform(kb, (fan_out,), jnp.float32, -bound, bound)
        return w, b

    k1, k2, k3 = jax.random.split(key, 3)
    w1, b1 = linear(k1, state_dim, HIDDEN)
    w2, b2 = linear(k2, HIDDEN, HIDDEN)
    w3, b3 = linear(k3, HIDDEN, action_dim)
    return (w1, b1, w2, b2, w3, b3)


def actor_reference(state, params, action_range):
    """Pure-JAX reference with identical torch semantics."""
    w1, b1, w2, b2, w3, b3 = params
    a = jnp.maximum(state @ w1.T + b1, 0.0)
    a = jnp.maximum(a @ w2.T + b2, 0.0)
    return jnp.tanh(a @ w3.T + b3) * action_range


if __name__ == "__main__":
    state_dim = 3        # pendulum observation: (cos theta, sin theta, theta_dot)
    action_dim = 1
    action_range = 2.5

    key = jax.random.PRNGKey(0)
    k_params, k1, k2, k3 = jax.random.split(key, 4)
    params = init_actor_params(k_params, state_dim, action_dim)

    # (1) Small batch (typical per-step use): single tile, ragged lanes.
    s1 = jax.random.normal(k1, (8, state_dim), dtype=jnp.float32)
    o1 = jax.block_until_ready(actor_forward(s1, params, action_range))
    r1 = actor_reference(s1, params, action_range)
    assert o1.shape == (8, action_dim)
    assert jnp.allclose(o1, r1, atol=2e-5), "small-batch mismatch"

    # (2) Multi-step grid with a ragged last block (no wrapper padding),
    #     small block_b to force several grid steps with resident weights.
    s2 = jax.random.normal(k2, (1000, state_dim), dtype=jnp.float32)
    o2 = jax.block_until_ready(actor_forward(s2, params, action_range, block_b=256))
    r2 = actor_reference(s2, params, action_range)
    assert o2.shape == (1000, action_dim)
    assert jnp.allclose(o2, r2, atol=2e-5), "multi-tile mismatch"

    # (3) Larger batch via the transposed-state fast path (no wrapper-side
    #     transpose at all) -- exercises the >=2-grid-step megacore split.
    s3 = jax.random.normal(k3, (2500, state_dim), dtype=jnp.float32)
    o3 = jax.block_until_ready(
        actor_forward(s3.T, params, action_range, transposed_state=True))
    r3 = actor_reference(s3, params, action_range)
    assert o3.shape == (2500, action_dim)
    assert jnp.allclose(o3, r3, atol=2e-5), "large-batch mismatch"

    print("KERNEL_OK")
</pallas_src>

<mosaic_0001>
module attributes {stable_mosaic.version = 11 : i64} {
  func.func @actor_kernel(%arg0: i32, %arg1: memref<3x128xf32, #tpu.memory_space<vmem>>, %arg2: memref<16x23xf32, #tpu.memory_space<vmem>>, %arg3: memref<1x128xf32, #tpu.memory_space<vmem>>) attributes {dimension_semantics = [#tpu.dimension_semantics<parallel>], iteration_bounds = array<i64: 1>, scalar_prefetch = 0 : i64, scratch_operands = 0 : i64, tpu.core_type = #tpu.core_type<tc>, window_params = [{transform_indices = @transform_0, window_bounds = array<i64: 3, 128>}, {pipeline_mode = #tpu.pipeline_mode<synchronous>, transform_indices = @transform_1, window_bounds = array<i64: 16, 23>}, {transform_indices = @transform_2, window_bounds = array<i64: 1, 128>}]} {
    %c0 = arith.constant 0 : index
    %c0_0 = arith.constant 0 : index
    %0 = vector.load %arg2[%c0, %c0_0] : memref<16x23xf32, #tpu.memory_space<vmem>>, vector<16x23xf32>
    %1 = vector.extract_strided_slice %0 {offsets = [0, 0], sizes = [16, 16], strides = [1, 1]} : vector<16x23xf32> to vector<16x16xf32>
    %2 = vector.extract_strided_slice %0 {offsets = [0, 16], sizes = [16, 3], strides = [1, 1]} : vector<16x23xf32> to vector<16x3xf32>
    %3 = vector.extract_strided_slice %0 {offsets = [0, 19], sizes = [16, 1], strides = [1, 1]} : vector<16x23xf32> to vector<16x1xf32>
    %4 = vector.extract_strided_slice %0 {offsets = [0, 20], sizes = [16, 1], strides = [1, 1]} : vector<16x23xf32> to vector<16x1xf32>
    %5 = vector.extract_strided_slice %0 {offsets = [0, 21], sizes = [16, 1], strides = [1, 1]} : vector<16x23xf32> to vector<16x1xf32>
    %6 = vector.extract_strided_slice %0 {offsets = [0, 22], sizes = [1, 1], strides = [1, 1]} : vector<16x23xf32> to vector<1x1xf32>
    %c0_1 = arith.constant 0 : index
    %c0_2 = arith.constant 0 : index
    %7 = vector.load %arg1[%c0_1, %c0_2] : memref<3x128xf32, #tpu.memory_space<vmem>>, vector<3x128xf32>
    %cst = arith.constant dense<0.000000e+00> : vector<16x128xf32>
    %8 = tpu.matmul %2, %7, %cst {dimension_numbers = #tpu.dot_dimension_numbers<[1], [0], [0], [1], [0, 0, 1, 1], [], []>} : vector<16x3xf32>, vector<3x128xf32>, vector<16x128xf32> -> vector<16x128xf32>
    %9 = vector.broadcast %3 : vector<16x1xf32> to vector<16x128xf32>
    %10 = arith.addf %8, %9 : vector<16x128xf32>
    %cst_3 = arith.constant 0.000000e+00 : f32
    %11 = vector.broadcast %cst_3 : f32 to vector<16x128xf32>
    %12 = arith.maximumf %10, %11 : vector<16x128xf32>
    %cst_4 = arith.constant dense<0.000000e+00> : vector<16x128xf32>
    %13 = tpu.matmul %1, %12, %cst_4 {dimension_numbers = #tpu.dot_dimension_numbers<[1], [0], [0], [1], [0, 0, 1, 1], [], []>} : vector<16x16xf32>, vector<16x128xf32>, vector<16x128xf32> -> vector<16x128xf32>
    %14 = vector.broadcast %4 : vector<16x1xf32> to vector<16x128xf32>
    %15 = arith.addf %13, %14 : vector<16x128xf32>
    %cst_5 = arith.constant 0.000000e+00 : f32
    %16 = vector.broadcast %cst_5 : f32 to vector<16x128xf32>
    %17 = arith.maximumf %15, %16 : vector<16x128xf32>
    %18 = vector.broadcast %5 : vector<16x1xf32> to vector<16x128xf32>
    %19 = arith.mulf %18, %17 : vector<16x128xf32>
    %cst_6 = arith.constant dense<0.000000e+00> : vector<128xf32>
    %20 = vector.multi_reduction <add>, %19, %cst_6 [0] : vector<16x128xf32> to vector<128xf32>
    %21 = vector.shape_cast %20 : vector<128xf32> to vector<1x128xf32>
    %22 = vector.broadcast %6 : vector<1x1xf32> to vector<1x128xf32>
    %23 = arith.addf %21, %22 : vector<1x128xf32>
    %24 = math.tanh %23 : vector<1x128xf32>
    %cst_7 = arith.constant 2.500000e+00 : f32
    %25 = vector.broadcast %cst_7 : f32 to vector<1x128xf32>
    %26 = arith.mulf %24, %25 : vector<1x128xf32>
    %c0_8 = arith.constant 0 : index
    %c0_9 = arith.constant 0 : index
    %27 = vector.load %arg3[%c0_8, %c0_9] : memref<1x128xf32, #tpu.memory_space<vmem>>, vector<1x128xf32>
    tpu.vector_store %arg3[%c0_8, %c0_9], %26 {strides = array<i32>} : memref<1x128xf32, #tpu.memory_space<vmem>>, vector<1x128xf32>,
    return
  }
  func.func @transform_0(%arg0: i32) -> (i32, i32) {
    %c0_i32 = arith.constant 0 : i32
    %c0_i32_0 = arith.constant 0 : i32
    return %c0_i32, %arg0 : i32, i32
  }
  func.func @transform_1(%arg0: i32) -> (i32, i32) {
    %c0_i32 = arith.constant 0 : i32
    %c0_i32_0 = arith.constant 0 : i32
    %c0_i32_1 = arith.constant 0 : i32
    return %c0_i32, %c0_i32_0 : i32, i32
  }
  func.func @transform_2(%arg0: i32) -> (i32, i32) {
    %c0_i32 = arith.constant 0 : i32
    %c0_i32_0 = arith.constant 0 : i32
    return %c0_i32, %arg0 : i32, i32
  }
}

</mosaic_0001>

<llo_original>
// kernel: tpu_custom_call.1
$region0: #{tpu_custom_call.1}
  #allocation0 [shape = 'u32[]', space=smem, size = 0x4, offset = 0x4, fixed_abs, tag = 'smem constant byte address 0x4 - core index']
  #allocation1 [shape = 'u32[144,128]{1,0:T(1,128)}', space=vmem, size = 0x12000, scoped, tag = 'internal scratch']
  %s0 = inlined_call_operand.hbm [shape: f32[3,8], index: 0, kind: input, shape index: {}]
  %s1 = inlined_call_operand.hbm [shape: f32[16,23], index: 1, kind: input, shape index: {}]
  %s2 = inlined_call_operand.hbm [shape: f32[1,8], index: 2, kind: output, shape index: {}]
  %s3 = sld [smem:[#allocation0]]
  $region26: #{tpu_custom_call.1} parent=0
    _
  %s5 = ssub.s32 1, %s3
  %s6 = scalar_select 0, %s5, %s3
  $region1: #{tpu_custom_call.1} parent=0
    #allocation2 [shape = 'u8[2048]{0}', space=vmem, size = 0x800, scoped, tag = 'input window, operand 0, single buffered']
    #allocation3 [shape = 's32[1]{0}', space=sflag, size = 0x4, scoped, tag = 'scoped memory for tpu_custom_call.1']
    #allocation4 [shape = 's32[1]{0}', space=sflag, size = 0x4, scoped, tag = 'scoped memory for tpu_custom_call.1']
    #allocation5 [shape = 'u8[8192]{0}', space=vmem, size = 0x2000, scoped, tag = 'input window, operand 1, single buffered']
    #allocation6 [shape = 's32[1]{0}', space=sflag, size = 0x4, scoped, tag = 'scoped memory for tpu_custom_call.1']
    #allocation7 [shape = 'u8[512]{0}', space=vmem, size = 0x400, scoped, tag = 'output window, operand 0, single buffered']
    %7 = vsyncpa [#allocation3], 0
    %8 = vsyncpa [#allocation6], 0
    %9 = vsyncpa [#allocation4], 0
    // Predicated region
    $region2: #{tpu_custom_call.1} parent=1 // pred_check
      _
    $region3: #{tpu_custom_call.1} parent=1 // pred_check_branch
      %11 = sbr.rel (0) target = $region5
    $region4: #{tpu_custom_call.1} parent=1 // pred_region
      %s13 = ssub.s32 64, 64
      %14 = vsyncadd [#allocation3], %s13
      %s16 = sshll.u32 [#allocation2], 4
      %s17 = int_to_ptr.vmem [resolvable:$true] %s16
      %19 = dma.hbm_to_vmem [thread:$0]  %s0, 64, %s17, [#allocation3]
    $region5: #{tpu_custom_call.1} parent=1 // pred_fallthru
      _
    // Predicated region
    $region6: #{tpu_custom_call.1} parent=1 // pred_check
      _
    $region7: #{tpu_custom_call.1} parent=1 // pred_check_branch
      %21 = sbr.rel (0) target = $region9
    $region8: #{tpu_custom_call.1} parent=1 // pred_region
      %s23 = ssub.s32 256, 256
      %24 = vsyncadd [#allocation6], %s23
      %s25 = sshll.u32 [#allocation5], 4
      %s26 = int_to_ptr.vmem [resolvable:$true] %s25
      %31 = dma.hbm_to_vmem [thread:$0]  %s1, 256, %s26, [#allocation6], 128, 128, 8
    $region9: #{tpu_custom_call.1} parent=1 // pred_fallthru
      _
    // Predicated region
    $region10: #{tpu_custom_call.1} parent=1 // pred_check
      _
    $region11: #{tpu_custom_call.1} parent=1 // pred_check_branch
      %33 = sbr.rel (0) target = $region13
    $region12: #{tpu_custom_call.1} parent=1 // pred_region
      %34 = dma.done [#allocation3], 64
    $region13: #{tpu_custom_call.1} parent=1 // pred_fallthru
      _
    // Predicated region
    $region14: #{tpu_custom_call.1} parent=1 // pred_check
      _
    $region15: #{tpu_custom_call.1} parent=1 // pred_check_branch
      %36 = sbr.rel (0) target = $region17
    $region16: #{tpu_custom_call.1} parent=1 // pred_region
      %37 = dma.done [#allocation6], 256
    $region17: #{tpu_custom_call.1} parent=1 // pred_fallthru
      _
    %v38 = vld [vmem:[#allocation5] sm:$0xff]
    %v39 = vld [vmem:[#allocation5 + $0x8] sm:$0xff]
    %v40 = vld [vmem:[#allocation2] sm:$0x7]
    %42 = vset.pattern.permute.xlu0 19
    %43 = vperm.xlu0 %42, %v38
    %v44 = vpop.permute.xlu0 %43
    %47 = vset.pattern.permute.xlu0 19
    %48 = vperm.xlu0 %47, %v39
    %v49 = vpop.permute.xlu0 %48
    %51 = vrot.lane.b32.xlu0 %v38, 112
    %v52 = vpop.permute.xlu0 %51
    %53 = vrot.lane.b32.xlu0 %v39, 112
    %v54 = vpop.permute.xlu0 %53
    %vm55 = vcmask 23552
    %v56 = vsel %vm55, %v52, 0
    %v58 = vsel %vm55, %v54, 0
    %vm60 = vcmask 1042432
    %v62 = vsel %vm60, %v40, 0
    %64 = vmatprep.subr.mxu0 0.0
    %65 = vmatpush1.msra.mxu0 %v62
    %66 = vmatprep.subr.mxu0 0.0
    %67 = vmatpush1.msra.mxu0 0.0
    %68 = vmatprep.subr.mxu0 0.0
    %69 = vmatpush1.msra.mxu0 0.0
    %70 = vmatprep.subr.mxu0 0.0
    %71 = vmatpush1.msra.mxu0 0.0
    %72 = vmatprep.subr.mxu0 0.0
    %73 = vmatpush1.msra.mxu0 0.0
    %74 = vmatprep.subr.mxu0 0.0
    %75 = vmatpush1.msra.mxu0 0.0
    %76 = vmatprep.subr.mxu0 0.0
    %77 = vmatpush1.msra.mxu0 0.0
    %78 = vmatprep.subr.mxu0 0.0
    %79 = vmatpush1.msra.mxu0 0.0
    %80 = vmatprep.subr.mxu0 0.0
    %81 = vmatpush1.msra.mxu0 0.0
    %82 = vmatprep.subr.mxu0 0.0
    %83 = vmatpush1.msra.mxu0 0.0
    %84 = vmatprep.subr.mxu0 0.0
    %85 = vmatpush1.msra.mxu0 0.0
    %86 = vmatprep.subr.mxu0 0.0
    %87 = vmatpush1.msra.mxu0 0.0
    %88 = vmatprep.subr.mxu0 0.0
    %89 = vmatpush1.msra.mxu0 0.0
    %90 = vmatprep.subr.mxu0 0.0
    %91 = vmatpush1.msra.mxu0 0.0
    %92 = vmatprep.subr.mxu0 0.0
    %93 = vmatpush1.msra.mxu0 0.0
    %94 = vmatprep.subr.mxu0 0.0
    %95 = vmatpush1.msra.mxu0 0.0
    %96 = vmatprep.subr.mxu0 0.0
    %97 = vmatpush1.msra.mxu0 0.0
    %98 = vmatprep.subr.mxu0 0.0
    %99 = vmatpush1.msra.mxu0 0.0
    %100 = vmatprep.subr.mxu0 0.0
    %101 = vmatpush1.msra.mxu0 0.0
    %102 = vmatprep.subr.mxu0 0.0
    %103 = vmatpush1.msra.mxu0 0.0
    %104 = vmatprep.subr.mxu0 0.0
    %105 = vmatpush1.msra.mxu0 0.0
    %106 = vmatprep.subr.mxu0 0.0
    %107 = vmatpush1.msra.mxu0 0.0
    %108 = vmatprep.subr.mxu0 0.0
    %109 = vmatpush1.msra.mxu0 0.0
    %110 = vmatprep.subr.mxu0 0.0
    %111 = vmatpush1.msra.mxu0 0.0
    %112 = vmatprep.subr.mxu0 0.0
    %113 = vmatpush1.msra.mxu0 0.0
    %114 = vmatprep.subr.mxu0 0.0
    %115 = vmatpush1.msra.mxu0 0.0
    %116 = vmatprep.subr.mxu0 0.0
    %117 = vmatpush1.msra.mxu0 0.0
    %118 = vmatprep.subr.mxu0 0.0
    %119 = vmatpush1.msra.mxu0 0.0
    %120 = vmatprep.subr.mxu0 0.0
    %121 = vmatpush1.msra.mxu0 0.0
    %122 = vmatprep.subr.mxu0 0.0
    %123 = vmatpush1.msra.mxu0 0.0
    %124 = vmatprep.subr.mxu0 0.0
    %125 = vmatpush1.msra.mxu0 0.0
    %126 = vmatprep.subr.mxu0 0.0
    %127 = vmatpush1.msra.mxu0 0.0
    %128 = vmatprep.mubr.f32.mxu0 0.0
    %129 = vmatmul.mubr.f32.gmra.mrb[0].mxu0 %v56
    %v130 = vpop.f32.mrb[0].mxu0
    %v131 = vadd.f32 %v44, %v130
    %v132 = vpop.f32.mrb[0].mxu0
    %133 = vmatprep.mubr.f32.mxu0 0.0
    %134 = vmatmul.mubr.f32.gmra.mrb[0].mxu0 %v58
    %v135 = vpop.f32.mrb[0].mxu0
    %v136 = vadd.f32 %v49, %v135
    %v137 = vpop.f32.mrb[0].mxu0
    %138 = vdwg.mxu0
    %v139 = vmax.f32 %v131, 0.0
    %v140 = vmax.f32 %v136, 0.0
    %141 = vset.pattern.permute.xlu0 20
    %142 = vperm.xlu0 %141, %v38
    %v143 = vpop.permute.xlu0 %142
    %145 = vset.pattern.permute.xlu0 20
    %146 = vperm.xlu0 %145, %v39
    %v147 = vpop.permute.xlu0 %146
    %vm149 = vcmask 130048
    %v150 = vsel %vm149, %v38, 0
    %v152 = vsel %vm149, %v39, 0
    %154 = vmatprep.subr.mxu0 0.0
    %155 = vmatpush1.msra.mxu0 %v139
    %156 = vmatprep.subr.mxu0 0.0
    %157 = vmatpush1.msra.mxu0 %v140
    %158 = vmatprep.subr.mxu0 0.0
    %159 = vmatpush1.msra.mxu0 0.0
    %160 = vmatprep.subr.mxu0 0.0
    %161 = vmatpush1.msra.mxu0 0.0
    %162 = vmatprep.subr.mxu0 0.0
    %163 = vmatpush1.msra.mxu0 0.0
    %164 = vmatprep.subr.mxu0 0.0
    %165 = vmatpush1.msra.mxu0 0.0
    %166 = vmatprep.subr.mxu0 0.0
    %167 = vmatpush1.msra.mxu0 0.0
    %168 = vmatprep.subr.mxu0 0.0
    %169 = vmatpush1.msra.mxu0 0.0
    %170 = vmatprep.subr.mxu0 0.0
    %171 = vmatpush1.msra.mxu0 0.0
    %172 = vmatprep.subr.mxu0 0.0
    %173 = vmatpush1.msra.mxu0 0.0
    %174 = vmatprep.subr.mxu0 0.0
    %175 = vmatpush1.msra.mxu0 0.0
    %176 = vmatprep.subr.mxu0 0.0
    %177 = vmatpush1.msra.mxu0 0.0
    %178 = vmatprep.subr.mxu0 0.0
    %179 = vmatpush1.msra.mxu0 0.0
    %180 = vmatprep.subr.mxu0 0.0
    %181 = vmatpush1.msra.mxu0 0.0
    %182 = vmatprep.subr.mxu0 0.0
    %183 = vmatpush1.msra.mxu0 0.0
    %184 = vmatprep.subr.mxu0 0.0
    %185 = vmatpush1.msra.mxu0 0.0
    %186 = vmatprep.subr.mxu0 0.0
    %187 = vmatpush1.msra.mxu0 0.0
    %188 = vmatprep.subr.mxu0 0.0
    %189 = vmatpush1.msra.mxu0 0.0
    %190 = vmatprep.subr.mxu0 0.0
    %191 = vmatpush1.msra.mxu0 0.0
    %192 = vmatprep.subr.mxu0 0.0
    %193 = vmatpush1.msra.mxu0 0.0
    %194 = vmatprep.subr.mxu0 0.0
    %195 = vmatpush1.msra.mxu0 0.0
    %196 = vmatprep.subr.mxu0 0.0
    %197 = vmatpush1.msra.mxu0 0.0
    %198 = vmatprep.subr.mxu0 0.0
    %199 = vmatpush1.msra.mxu0 0.0
    %200 = vmatprep.subr.mxu0 0.0
    %201 = vmatpush1.msra.mxu0 0.0
    %202 = vmatprep.subr.mxu0 0.0
    %203 = vmatpush1.msra.mxu0 0.0
    %204 = vmatprep.subr.mxu0 0.0
    %205 = vmatpush1.msra.mxu0 0.0
    %206 = vmatprep.subr.mxu0 0.0
    %207 = vmatpush1.msra.mxu0 0.0
    %208 = vmatprep.subr.mxu0 0.0
    %209 = vmatpush1.msra.mxu0 0.0
    %210 = vmatprep.subr.mxu0 0.0
    %211 = vmatpush1.msra.mxu0 0.0
    %212 = vmatprep.subr.mxu0 0.0
    %213 = vmatpush1.msra.mxu0 0.0
    %214 = vmatprep.subr.mxu0 0.0
    %215 = vmatpush1.msra.mxu0 0.0
    %216 = vmatprep.subr.mxu0 0.0
    %217 = vmatpush1.msra.mxu0 0.0
    %218 = vmatprep.mubr.f32.mxu0 0.0
    %219 = vmatmul.mubr.f32.gmra.mrb[0].mxu0 %v150
    %v220 = vpop.f32.mrb[0].mxu0
    %v221 = vadd.f32 %v143, %v220
    %v222 = vpop.f32.mrb[0].mxu0
    %223 = vmatprep.mubr.f32.mxu0 0.0
    %224 = vmatmul.mubr.f32.gmra.mrb[0].mxu0 %v152
    %v225 = vpop.f32.mrb[0].mxu0
    %v226 = vadd.f32 %v147, %v225
    %v227 = vpop.f32.mrb[0].mxu0
    %228 = vdwg.mxu0
    %v229 = vmax.f32 %v221, 0.0
    %v230 = vmax.f32 %v226, 0.0
    %231 = vset.pattern.permute.xlu0 21
    %232 = vperm.xlu0 %231, %v38
    %v233 = vpop.permute.xlu0 %232
    %235 = vset.pattern.permute.xlu0 21
    %236 = vperm.xlu0 %235, %v39
    %v237 = vpop.permute.xlu0 %236
    %v239 = vmul.f32 %v233, %v229
    %v240 = vmul.f32 %v237, %v230
    %v241 = vadd.f32 %v239, %v240
    %v242 = vrot.slane %v241, 4
    %v243 = vadd.f32 %v241, %v242
    %v244 = vrot.slane %v243, 2
    %v245 = vadd.f32 %v243, %v244
    %v246 = vrot.slane %v245, 1
    %v247 = vadd.f32 %v245, %v246
    %248 = vset.pattern.permute.xlu0 22
    %249 = vperm.xlu0 %248, %v38
    %v250 = vpop.permute.xlu0 %249
    %v252 = vadd.f32 %v247, %v250
    %v253 = vtanh.pop %v252
    %v254 = vmul.f32 %v253, 2.5
    %255 = vst [vmem:[#allocation7] sm:$0x1] %v254
    // Predicated region
    $region18: #{tpu_custom_call.1} parent=1 // pred_check
      _
    $region19: #{tpu_custom_call.1} parent=1 // pred_check_branch
      %257 = sbr.rel (0) target = $region21
    $region20: #{tpu_custom_call.1} parent=1 // pred_region
      %s259 = ssub.s32 16, 16
      %260 = vsyncadd [#allocation4], %s259
      %s262 = sshll.u32 [#allocation7], 4
      %s263 = int_to_ptr.vmem [resolvable:$true] %s262
      %265 = dma.vmem_to_hbm [thread:$0]  %s263, 16, %s2, [#allocation4]
    $region21: #{tpu_custom_call.1} parent=1 // pred_fallthru
      _
    // Predicated region
    $region22: #{tpu_custom_call.1} parent=1 // pred_check
      _
    $region23: #{tpu_custom_call.1} parent=1 // pred_check_branch
      %267 = sbr.rel (0) target = $region25
    $region24: #{tpu_custom_call.1} parent=1 // pred_region
      %268 = dma.done [#allocation4], 16
    $region25: #{tpu_custom_call.1} parent=1 // pred_fallthru
      _
    %269 = vsyncpa [#allocation3], 1
    %270 = vsyncpa [#allocation6], 1
    %271 = vsyncpa [#allocation4], 1

</llo_original>
